<compile_context>
chip_gen: v6e
topology: v6e:2x2x1
jax: 0.10.0
libtpu: 0.0.40
codegen_flags: <defaults>
</compile_context>

<pallas_src>
import functools

import jax
import jax.numpy as jnp
from jax.experimental import pallas as pl
from jax.experimental.pallas import tpu as pltpu

LANE = 128
SUBLANE = 8


def _smape_kernel(yt_ref, yp_ref, out_ref, acc_ref, *,
                  scale, rows, tile_rows, steps_per_core):
    c = pl.program_id(0)   # core-split axis ("parallel")
    i = pl.program_id(1)   # reduction axis ("arbitrary")

    @pl.when(i == 0)
    def _():
        acc_ref[...] = jnp.zeros_like(acc_ref)

    # Upcast after load: inputs stay in their native dtype in HBM.
    yt = yt_ref[...].astype(jnp.float32)
    yp = yp_ref[...].astype(jnp.float32)

    num = jnp.abs(yp - yt)
    # PyTorch's "/ 2.0" of the denominator is folded into `scale` (= 200 / N).
    den = jnp.abs(yt) + jnp.abs(yp)
    # EUP reciprocal overlaps with the VPU abs/add work. 0/0 -> NaN matches
    # the PyTorch reference when y_true == y_pred == 0.
    smape = num * pl.reciprocal(den, approx=False)

    def accumulate(x):
        # (tile_rows, LANE) -> (tile_rows//8, 8, LANE), reduce the leading
        # (non-minor) axis: pure VPU vreg adds, no per-step XLU reduce.
        acc_ref[...] += x.reshape(tile_rows // SUBLANE, SUBLANE, LANE).sum(axis=0)

    blk_start = (c * steps_per_core + i) * tile_rows
    if rows % tile_rows == 0:
        # Every block is full -> no tail handling anywhere (demo path).
        accumulate(smape)
    else:
        @pl.when(blk_start + tile_rows <= rows)
        def _():
            accumulate(smape)

        @pl.when(blk_start + tile_rows > rows)
        def _():
            # Ragged last block: rows past `rows` contain undefined DMA data;
            # zero them before accumulating (boundary is a trace-time const).
            row = blk_start + jax.lax.broadcasted_iota(
                jnp.int32, (tile_rows, LANE), 0)
            accumulate(jnp.where(row < rows, smape, 0.0))

    @pl.when(i == steps_per_core - 1)
    def _():
        # One cross-sublane (XLU) reduce per core + combined 200/N scale.
        out_ref[...] = (jnp.sum(acc_ref[...], axis=0, keepdims=True)
                        * scale).reshape(1, 1, LANE)


def smape_loss(y_true, y_pred, *, tile_rows=8192):
    """100 * mean(|yp - yt| / ((|yt| + |yp|) / 2)) over all elements."""
    y_true = jnp.asarray(y_true)
    y_pred = jnp.asarray(y_pred)
    assert y_true.shape == y_pred.shape
    assert tile_rows % SUBLANE == 0

    total_n = y_true.size  # true element count for the mean (static)

    yt = y_true.reshape(-1)
    yp = y_pred.reshape(-1)

    # Sizes that are a multiple of 8*128 reshape with zero copies.
    block_elems = SUBLANE * LANE
    padded_n = ((total_n + block_elems - 1) // block_elems) * block_elems
    if padded_n != total_n:
        # TODO(synk): unaligned sizes still pay one padded copy in HBM; could
        # be removed with a separate <1024-element tail pass.
        pad = padded_n - total_n
        # Pad with 1.0: num = 0, den = 2 -> contributes exactly 0 to the sum.
        yt = jnp.concatenate([yt, jnp.ones((pad,), yt.dtype)])
        yp = jnp.concatenate([yp, jnp.ones((pad,), yp.dtype)])

    rows = padded_n // LANE
    yt2 = yt.reshape(rows, LANE)
    yp2 = yp.reshape(rows, LANE)

    # Block size: multiple of 8 sublanes; default 8192 rows = 4 MiB f32 block,
    # ~16 MiB double-buffered inputs, within the 32 MiB scoped VMEM requested
    # below on all of v5e / v6e / v7x.
    tr = min(tile_rows, rows)
    steps_total = pl.cdiv(rows, tr)

    # 2-way core split (v7x has 2 TensorCores). Enabled only when the step
    # count splits evenly so every block index stays in bounds; on single-core
    # v5e/v6e the extra axis is just a sequential outer loop (harmless).
    ncs = 2 if (steps_total >= 2 and steps_total % 2 == 0) else 1
    spc = steps_total // ncs

    kernel = functools.partial(
        _smape_kernel,
        scale=200.0 / float(total_n),
        rows=rows,
        tile_rows=tr,
        steps_per_core=spc,
    )

    in_idx = lambda c, i: (c * spc + i, 0)

    partials = pl.pallas_call(
        kernel,
        out_shape=jax.ShapeDtypeStruct((ncs, 1, LANE), jnp.float32),
        grid_spec=pltpu.PrefetchScalarGridSpec(
            num_scalar_prefetch=0,
            grid=(ncs, spc),
            in_specs=[
                pl.BlockSpec((tr, LANE), in_idx),
                pl.BlockSpec((tr, LANE), in_idx),
            ],
            out_specs=pl.BlockSpec((1, 1, LANE), lambda c, i: (c, 0, 0)),
            scratch_shapes=[pltpu.VMEM((SUBLANE, LANE), jnp.float32)],
        ),
        compiler_params=pltpu.CompilerParams(
            dimension_semantics=("parallel", "arbitrary"),
            vmem_limit_bytes=32 * 1024 * 1024,
        ),
    )(yt2, yp2)

    # Tiny (ncs, 1, 128) lane-partial sums -> scalar in the wrapper.
    return jnp.sum(partials)


def smape_loss_ref(y_true, y_pred):
    y_true = y_true.astype(jnp.float32)
    y_pred = y_pred.astype(jnp.float32)
    num = jnp.abs(y_pred - y_true)
    den = (jnp.abs(y_true) + jnp.abs(y_pred)) / 2.0
    return 100.0 * jnp.mean(num / den)


if __name__ == "__main__":
    key = jax.random.PRNGKey(0)
    k1, k2 = jax.random.split(key)
    # Small NCHW-shaped inputs, kept away from zero so the denominator is safe
    # (0/0 -> NaN matches the PyTorch reference's behavior).
    shape = (2, 4, 16, 16)
    y_true = jax.random.uniform(k1, shape, jnp.float32, minval=0.5, maxval=2.0)
    y_pred = jax.random.uniform(k2, shape, jnp.float32, minval=0.5, maxval=2.0)

    out = smape_loss(y_true, y_pred)
    out = jax.block_until_ready(out)

    ref = smape_loss_ref(y_true, y_pred)
    assert jnp.allclose(out, ref, rtol=1e-5, atol=1e-5), (out, ref)
    print("KERNEL_OK")
</pallas_src>

<mosaic_0001>
module attributes {stable_mosaic.version = 11 : i64} {
  func.func @_smape_kernel(%arg0: i32, %arg1: i32, %arg2: memref<16x128xf32, #tpu.memory_space<vmem>>, %arg3: memref<16x128xf32, #tpu.memory_space<vmem>>, %arg4: memref<1x1x128xf32, #tpu.memory_space<vmem>>, %arg5: memref<8x128xf32, #tpu.memory_space<vmem>>) attributes {dimension_semantics = [#tpu.dimension_semantics<parallel>, #tpu.dimension_semantics<arbitrary>], iteration_bounds = array<i64: 1, 1>, scalar_prefetch = 0 : i64, scratch_operands = 1 : i64, tpu.core_type = #tpu.core_type<tc>, window_params = [{transform_indices = @transform_0, window_bounds = array<i64: 16, 128>}, {transform_indices = @transform_1, window_bounds = array<i64: 16, 128>}, {transform_indices = @transform_2, window_bounds = array<i64: 1, 1, 128>}]} {
    %c0_i32 = arith.constant 0 : i32
    %0 = arith.cmpi eq, %arg1, %c0_i32 : i32
    %1 = arith.extui %0 : i1 to i32
    %c0_i32_0 = arith.constant 0 : i32
    %2 = arith.cmpi ne, %1, %c0_i32_0 : i32
    scf.if %2 {
      %cst_10 = arith.constant 0.000000e+00 : f32
      %20 = vector.broadcast %cst_10 : f32 to vector<8x128xf32>
      %c0_11 = arith.constant 0 : index
      %c0_12 = arith.constant 0 : index
      %21 = vector.load %arg5[%c0_11, %c0_12] : memref<8x128xf32, #tpu.memory_space<vmem>>, vector<8x128xf32>
      tpu.vector_store %arg5[%c0_11, %c0_12], %20 {strides = array<i32>} : memref<8x128xf32, #tpu.memory_space<vmem>>, vector<8x128xf32>,
    } else {
    }
    %c0 = arith.constant 0 : index
    %c0_1 = arith.constant 0 : index
    %3 = vector.load %arg2[%c0, %c0_1] : memref<16x128xf32, #tpu.memory_space<vmem>>, vector<16x128xf32>
    %c0_2 = arith.constant 0 : index
    %c0_3 = arith.constant 0 : index
    %4 = vector.load %arg3[%c0_2, %c0_3] : memref<16x128xf32, #tpu.memory_space<vmem>>, vector<16x128xf32>
    %5 = arith.subf %4, %3 : vector<16x128xf32>
    %6 = math.absf %5 : vector<16x128xf32>
    %7 = math.absf %3 : vector<16x128xf32>
    %8 = math.absf %4 : vector<16x128xf32>
    %9 = arith.addf %7, %8 : vector<16x128xf32>
    %10 = tpu.reciprocal %9 : vector<16x128xf32> -> vector<16x128xf32>
    %11 = arith.mulf %6, %10 : vector<16x128xf32>
    %c0_4 = arith.constant 0 : index
    %c0_5 = arith.constant 0 : index
    %12 = vector.load %arg5[%c0_4, %c0_5] : memref<8x128xf32, #tpu.memory_space<vmem>>, vector<8x128xf32>
    %13 = vector.shape_cast %11 : vector<16x128xf32> to vector<2x8x128xf32>
    %cst = arith.constant dense<0.000000e+00> : vector<8x128xf32>
    %14 = vector.multi_reduction <add>, %13, %cst [0] : vector<2x8x128xf32> to vector<8x128xf32>
    %15 = arith.addf %12, %14 : vector<8x128xf32>
    %c0_6 = arith.constant 0 : index
    %c0_7 = arith.constant 0 : index
    %16 = vector.load %arg5[%c0_6, %c0_7] : memref<8x128xf32, #tpu.memory_space<vmem>>, vector<8x128xf32>
    tpu.vector_store %arg5[%c0_6, %c0_7], %15 {strides = array<i32>} : memref<8x128xf32, #tpu.memory_space<vmem>>, vector<8x128xf32>,
    %c0_i32_8 = arith.constant 0 : i32
    %17 = arith.cmpi eq, %arg1, %c0_i32_8 : i32
    %18 = arith.extui %17 : i1 to i32
    %c0_i32_9 = arith.constant 0 : i32
    %19 = arith.cmpi ne, %18, %c0_i32_9 : i32
    scf.if %19 {
      %c0_10 = arith.constant 0 : index
      %c0_11 = arith.constant 0 : index
      %20 = vector.load %arg5[%c0_10, %c0_11] : memref<8x128xf32, #tpu.memory_space<vmem>>, vector<8x128xf32>
      %cst_12 = arith.constant dense<0.000000e+00> : vector<128xf32>
      %21 = vector.multi_reduction <add>, %20, %cst_12 [0] : vector<8x128xf32> to vector<128xf32>
      %22 = vector.shape_cast %21 : vector<128xf32> to vector<1x128xf32>
      %cst_13 = arith.constant 0.09765625 : f32
      %23 = vector.broadcast %cst_13 : f32 to vector<1x128xf32>
      %24 = arith.mulf %22, %23 : vector<1x128xf32>
      %25 = vector.shape_cast %24 : vector<1x128xf32> to vector<1x1x128xf32>
      %c0_14 = arith.constant 0 : index
      %c0_15 = arith.constant 0 : index
      %c0_16 = arith.constant 0 : index
      %26 = vector.load %arg4[%c0_14, %c0_15, %c0_16] : memref<1x1x128xf32, #tpu.memory_space<vmem>>, vector<1x1x128xf32>
      tpu.vector_store %arg4[%c0_14, %c0_15, %c0_16], %25 {strides = array<i32>} : memref<1x1x128xf32, #tpu.memory_space<vmem>>, vector<1x1x128xf32>,
    } else {
    }
    return
  }
  func.func @transform_0(%arg0: i32, %arg1: i32) -> (i32, i32) {
    %c1_i32 = arith.constant 1 : i32
    %0 = arith.muli %arg0, %c1_i32 : i32
    %1 = arith.addi %0, %arg1 : i32
    %c0_i32 = arith.constant 0 : i32
    %c0_i32_0 = arith.constant 0 : i32
    return %1, %c0_i32 : i32, i32
  }
  func.func @transform_1(%arg0: i32, %arg1: i32) -> (i32, i32) {
    %c1_i32 = arith.constant 1 : i32
    %0 = arith.muli %arg0, %c1_i32 : i32
    %1 = arith.addi %0, %arg1 : i32
    %c0_i32 = arith.constant 0 : i32
    %c0_i32_0 = arith.constant 0 : i32
    return %1, %c0_i32 : i32, i32
  }
  func.func @transform_2(%arg0: i32, %arg1: i32) -> (i32, i32, i32) {
    %c0_i32 = arith.constant 0 : i32
    %c0_i32_0 = arith.constant 0 : i32
    %c0_i32_1 = arith.constant 0 : i32
    return %arg0, %c0_i32, %c0_i32_0 : i32, i32, i32
  }
}

</mosaic_0001>

<llo_original>
// kernel: tpu_custom_call.1
$region0: #{tpu_custom_call.1}
  #allocation0 [shape = 'u32[]', space=smem, size = 0x4, offset = 0x4, fixed_abs, tag = 'smem constant byte address 0x4 - core index']
  #allocation1 [shape = 'u32[144,128]{1,0:T(1,128)}', space=vmem, size = 0x12000, scoped, tag = 'internal scratch']
  #allocation2 [shape = 'f32[8,128]{1,0:T(8,128)}', space=vmem, size = 0x1000, scoped, tag = 'scratch operand']
  %s0 = inlined_call_operand.hbm [shape: f32[16,128], index: 0, kind: input, shape index: {}]
  %s1 = inlined_call_operand.hbm [shape: f32[16,128], index: 1, kind: input, shape index: {}]
  %s2 = inlined_call_operand.hbm [shape: f32[1,1,128], index: 2, kind: output, shape index: {}]
  %s3 = sld [smem:[#allocation0]]
  $region34: #{tpu_custom_call.1} parent=0
    _
  %s5 = ssub.s32 1, %s3
  %s6 = scalar_select 0, %s5, %s3
  $region1: #{tpu_custom_call.1} parent=0
    #allocation3 [shape = 'u8[8192]{0}', space=vmem, size = 0x2000, scoped, tag = 'input window, operand 0, single buffered']
    #allocation4 [shape = 's32[1]{0}', space=sflag, size = 0x4, scoped, tag = 'scoped memory for tpu_custom_call.1']
    #allocation5 [shape = 's32[1]{0}', space=sflag, size = 0x4, scoped, tag = 'scoped memory for tpu_custom_call.1']
    #allocation6 [shape = 'u8[8192]{0}', space=vmem, size = 0x2000, scoped, tag = 'input window, operand 1, single buffered']
    #allocation7 [shape = 's32[1]{0}', space=sflag, size = 0x4, scoped, tag = 'scoped memory for tpu_custom_call.1']
    #allocation8 [shape = 'u8[512]{0}', space=vmem, size = 0x400, scoped, tag = 'output window, operand 0, single buffered']
    %7 = vsyncpa [#allocation4], 0
    %8 = vsyncpa [#allocation7], 0
    %9 = vsyncpa [#allocation5], 0
    // Predicated region
    $region2: #{tpu_custom_call.1} parent=1 // pred_check
      _
    $region3: #{tpu_custom_call.1} parent=1 // pred_check_branch
      %11 = sbr.rel (0) target = $region5
    $region4: #{tpu_custom_call.1} parent=1 // pred_region
      %s12 = sadd.s32 0, 0
      %s13 = smul.u32 2, %s12
      %s15 = ssub.s32 256, 256
      %16 = vsyncadd [#allocation4], %s15
      %s17 = smul.addr %s13, 128
      %s18 = scalar_lea.hbm %s0, %s17
      %s19 = sshll.u32 [#allocation3], 4
      %s20 = int_to_ptr.vmem [resolvable:$true] %s19
      %25 = dma.hbm_to_vmem [thread:$0]  %s18, 256, %s20, [#allocation4], 128, 128, 8
    $region5: #{tpu_custom_call.1} parent=1 // pred_fallthru
      _
    // Predicated region
    $region6: #{tpu_custom_call.1} parent=1 // pred_check
      _
    $region7: #{tpu_custom_call.1} parent=1 // pred_check_branch
      %27 = sbr.rel (0) target = $region9
    $region8: #{tpu_custom_call.1} parent=1 // pred_region
      %s28 = sadd.s32 0, 0
      %s29 = smul.u32 2, %s28
      %s31 = ssub.s32 256, 256
      %32 = vsyncadd [#allocation7], %s31
      %s33 = smul.addr %s29, 128
      %s34 = scalar_lea.hbm %s1, %s33
      %s35 = sshll.u32 [#allocation6], 4
      %s36 = int_to_ptr.vmem [resolvable:$true] %s35
      %41 = dma.hbm_to_vmem [thread:$0]  %s34, 256, %s36, [#allocation7], 128, 128, 8
    $region9: #{tpu_custom_call.1} parent=1 // pred_fallthru
      _
    // Predicated region
    $region10: #{tpu_custom_call.1} parent=1 // pred_check
      _
    $region11: #{tpu_custom_call.1} parent=1 // pred_check_branch
      %43 = sbr.rel (0) target = $region13
    $region12: #{tpu_custom_call.1} parent=1 // pred_region
      %44 = dma.done [#allocation4], 256
    $region13: #{tpu_custom_call.1} parent=1 // pred_fallthru
      _
    // Predicated region
    $region14: #{tpu_custom_call.1} parent=1 // pred_check
      _
    $region15: #{tpu_custom_call.1} parent=1 // pred_check_branch
      %46 = sbr.rel (0) target = $region17
    $region16: #{tpu_custom_call.1} parent=1 // pred_region
      %47 = dma.done [#allocation7], 256
    $region17: #{tpu_custom_call.1} parent=1 // pred_fallthru
      _
    %s48 = sadd.s32 0, 0
    %s49 = smul.u32 2, %s48
    %s50 = sadd.s32 0, 0
    %s51 = smul.u32 2, %s50
    %p52 = scmp.eq.s32.totalorder 0, 0
    // Predicated region
    $region18: #{tpu_custom_call.1} parent=1 // pred_check
      %p53 = pneg %p52
    $region19: #{tpu_custom_call.1} parent=1 // pred_check_branch
      %55 = sbr.rel (%p53) target = $region21
    $region20: #{tpu_custom_call.1} parent=1 // pred_region
      %56 = vst [vmem:[#allocation2] sm:$0xff] 0.0
    $region21: #{tpu_custom_call.1} parent=1 // pred_fallthru
      _
    %v57 = vld [vmem:[#allocation3] sm:$0xff]
    %v58 = vld [vmem:[#allocation3 + $0x8] sm:$0xff]
    %v59 = vld [vmem:[#allocation6] sm:$0xff]
    %v60 = vld [vmem:[#allocation6 + $0x8] sm:$0xff]
    %v61 = vsub.f32 %v59, %v57
    %v62 = vsub.f32 %v60, %v58
    %v63 = vand.u32 2147483647, %v61
    %v64 = vand.u32 2147483647, %v62
    %v65 = vand.u32 2147483647, %v57
    %v66 = vand.u32 2147483647, %v58
    %v67 = vand.u32 2147483647, %v59
    %v68 = vand.u32 2147483647, %v60
    %v69 = vadd.f32 %v65, %v67
    %v70 = vadd.f32 %v66, %v68
    %v71 = vrcp.pop %v69
    %v72 = vrcp.pop %v70
    %v73 = vmul.f32 %v63, %v71
    %v74 = vmul.f32 %v64, %v72
    %v75 = vld [vmem:[#allocation2] sm:$0xff]
    %v76 = vadd.f32 %v73, %v74
    %v77 = vadd.f32 %v75, %v76
    %78 = vst [vmem:[#allocation2] sm:$0xff] %v77
    // Predicated region
    $region22: #{tpu_custom_call.1} parent=1 // pred_check
      %p79 = pneg %p52
    $region23: #{tpu_custom_call.1} parent=1 // pred_check_branch
      %81 = sbr.rel (%p79) target = $region25
    $region24: #{tpu_custom_call.1} parent=1 // pred_region
      %v82 = vld [vmem:[#allocation2] sm:$0xff]
      %v83 = vrot.slane %v82, 4
      %v84 = vadd.f32 %v82, %v83
      %v85 = vrot.slane %v84, 2
      %v86 = vadd.f32 %v84, %v85
      %v87 = vrot.slane %v86, 1
      %v88 = vadd.f32 %v86, %v87
      %v89 = vmul.f32 %v88, 0.09765625
      %90 = vst [vmem:[#allocation8] sm:$0x1] %v89
    $region25: #{tpu_custom_call.1} parent=1 // pred_fallthru
      _
    // Predicated region
    $region26: #{tpu_custom_call.1} parent=1 // pred_check
      _
    $region27: #{tpu_custom_call.1} parent=1 // pred_check_branch
      %92 = sbr.rel (0) target = $region29
    $region28: #{tpu_custom_call.1} parent=1 // pred_region
      %s94 = ssub.s32 16, 16
      %95 = vsyncadd [#allocation5], %s94
      %s97 = sshll.u32 [#allocation8], 4
      %s98 = int_to_ptr.vmem [resolvable:$true] %s97
      %100 = dma.vmem_to_hbm [thread:$0]  %s98, 16, %s2, [#allocation5]
    $region29: #{tpu_custom_call.1} parent=1 // pred_fallthru
      _
    // Predicated region
    $region30: #{tpu_custom_call.1} parent=1 // pred_check
      _
    $region31: #{tpu_custom_call.1} parent=1 // pred_check_branch
      %102 = sbr.rel (0) target = $region33
    $region32: #{tpu_custom_call.1} parent=1 // pred_region
      %103 = dma.done [#allocation5], 16
    $region33: #{tpu_custom_call.1} parent=1 // pred_fallthru
      _
    %104 = vsyncpa [#allocation4], 1
    %105 = vsyncpa [#allocation7], 1
    %106 = vsyncpa [#allocation5], 1

</llo_original>
